<compile_context>
chip_gen: v7x
topology: tpu7x:2x2x1
jax: 0.10.0
libtpu: 0.0.40
codegen_flags: <defaults>
</compile_context>

<pallas_src>
import functools

import jax
import jax.numpy as jnp
from jax.experimental import pallas as pl
from jax.experimental.pallas import tpu as pltpu


def _round_up(n, m):
    return ((n + m - 1) // m) * m


def _mlp_kernel(x_ref, w1_ref, b1_ref, w2_ref, b2_ref, w3_ref, b3_ref,
                w4t_ref, b4t_ref, o_ref, *, out_size):
    # x_ref: (TB, D_in) bf16; weights bf16; biases f32; o_ref: (OUT_PAD, TB) f32.
    x = x_ref[...]

    h = jnp.dot(x, w1_ref[...], preferred_element_type=jnp.float32) + b1_ref[...]
    h = jnp.maximum(h, 0.0).astype(jnp.bfloat16)

    h = jnp.dot(h, w2_ref[...], preferred_element_type=jnp.float32) + b2_ref[...]
    h = jnp.maximum(h, 0.0).astype(jnp.bfloat16)

    h = jnp.dot(h, w3_ref[...], preferred_element_type=jnp.float32) + b3_ref[...]
    h = jnp.maximum(h, 0.0).astype(jnp.bfloat16)

    # Final layer computed transposed so the output store is lane-dense:
    # (OUT_PAD, H3) . (TB, H3)^T  -> (OUT_PAD, TB)
    zt = jax.lax.dot_general(
        w4t_ref[...], h,
        dimension_numbers=(((1,), (1,)), ((), ())),
        preferred_element_type=jnp.float32) + b4t_ref[...]

    if out_size == 2:
        # row 0 (== torch column 0) -> sigmoid, row 1 -> tanh
        row = jax.lax.broadcasted_iota(jnp.int32, zt.shape, dimension=0)
        y = jnp.where(row == 0, jax.nn.sigmoid(zt), jnp.tanh(zt))
    else:
        y = jax.nn.sigmoid(zt)

    o_ref[...] = y.astype(o_ref.dtype)


def init_params(key, input_size, output_size):
    """Logical (un-padded) f32 params mirroring nn.Linear, stored as [in, out]."""
    dims = [
        (input_size, 2 * input_size),
        (2 * input_size, 4 * input_size),
        (4 * input_size, 3 * input_size),
        (3 * input_size, output_size),
    ]
    params = {}
    for i, (fan_in, fan_out) in enumerate(dims, start=1):
        key, kw, kb = jax.random.split(key, 3)
        bound = 1.0 / jnp.sqrt(jnp.float32(fan_in))
        params[f"w{i}"] = jax.random.uniform(
            kw, (fan_in, fan_out), jnp.float32, -bound, bound)
        params[f"b{i}"] = jax.random.uniform(
            kb, (fan_out,), jnp.float32, -bound, bound)
    return params


def pack_params(params):
    """Pad hidden dims to multiples of 128, cast weights to bf16, transpose fc4."""
    w1, w2, w3, w4 = params["w1"], params["w2"], params["w3"], params["w4"]
    d_in = w1.shape[0]
    h1 = _round_up(w1.shape[1], 128)
    h2 = _round_up(w2.shape[1], 128)
    h3 = _round_up(w3.shape[1], 128)
    out_size = w4.shape[1]
    out_pad = max(8, _round_up(out_size, 8))

    def pad2(a, r, c):
        return jnp.pad(a, ((0, r - a.shape[0]), (0, c - a.shape[1])))

    packed = {
        "w1": pad2(w1, d_in, h1).astype(jnp.bfloat16),
        "b1": pad2(params["b1"].reshape(1, -1), 1, h1),
        "w2": pad2(w2, h1, h2).astype(jnp.bfloat16),
        "b2": pad2(params["b2"].reshape(1, -1), 1, h2),
        "w3": pad2(w3, h2, h3).astype(jnp.bfloat16),
        "b3": pad2(params["b3"].reshape(1, -1), 1, h3),
        # fc4 stored transposed (PyTorch [out, in] layout), padded.
        "w4t": pad2(w4.T, out_pad, h3).astype(jnp.bfloat16),
        "b4t": pad2(params["b4"].reshape(-1, 1), out_pad, 1),
    }
    return packed


def mlp_forward(x, packed, output_size):
    """x: [B, input_size] float32/bfloat16.  packed: output of pack_params."""
    B, d_in = x.shape
    w1, b1 = packed["w1"], packed["b1"]
    w2, b2 = packed["w2"], packed["b2"]
    w3, b3 = packed["w3"], packed["b3"]
    w4t, b4t = packed["w4t"], packed["b4t"]
    h1, h2, h3 = w1.shape[1], w2.shape[1], w3.shape[1]
    out_pad = w4t.shape[0]

    # Batch tile: large enough to amortize per-step overhead, small enough to
    # double-buffer comfortably inside v7x's 64 MiB / v5e's scoped VMEM.
    TB = min(512, _round_up(max(B, 1), 16))
    B_pad = _round_up(B, TB)
    grid = (B_pad // TB,)

    xk = x.astype(jnp.bfloat16)
    if B_pad != B:
        xk = jnp.pad(xk, ((0, B_pad - B), (0, 0)))

    const = lambda i: (0, 0)

    flops = 2 * B_pad * (d_in * h1 + h1 * h2 + h2 * h3 + h3 * out_pad)
    weight_bytes = sum(int(a.size) * a.dtype.itemsize
                       for a in (w1, b1, w2, b2, w3, b3, w4t, b4t))
    bytes_accessed = int(xk.size) * 2 + weight_bytes + B_pad * out_pad * 4

    yt = pl.pallas_call(
        functools.partial(_mlp_kernel, out_size=output_size),
        out_shape=jax.ShapeDtypeStruct((out_pad, B_pad), jnp.float32),
        grid=grid,
        in_specs=[
            pl.BlockSpec((TB, d_in), lambda i: (i, 0)),   # x: streamed per tile
            pl.BlockSpec((d_in, h1), const),              # weights/biases: resident
            pl.BlockSpec((1, h1), const),
            pl.BlockSpec((h1, h2), const),
            pl.BlockSpec((1, h2), const),
            pl.BlockSpec((h2, h3), const),
            pl.BlockSpec((1, h3), const),
            pl.BlockSpec((out_pad, h3), const),
            pl.BlockSpec((out_pad, 1), const),
        ],
        out_specs=pl.BlockSpec((out_pad, TB), lambda i: (0, i)),
        compiler_params=pltpu.CompilerParams(
            dimension_semantics=("parallel",),            # megacore on v7x
            vmem_limit_bytes=32 * 1024 * 1024),
        cost_estimate=pl.CostEstimate(
            flops=int(flops),
            transcendentals=int(B_pad * out_pad),
            bytes_accessed=int(bytes_accessed)),
    )(xk, w1, b1, w2, b2, w3, b3, w4t, b4t)

    # Slice off row/column padding, transpose back to (B, output_size).
    return yt[:output_size, :B].T


def mlp_reference_bf16(x, params):
    """Pure-JAX reference with the same bf16-matmul / f32-accumulate numerics."""
    def lin(a, w, b):
        return jnp.dot(a.astype(jnp.bfloat16), w.astype(jnp.bfloat16),
                       preferred_element_type=jnp.float32) + b.reshape(1, -1)
    h = jnp.maximum(lin(x, params["w1"], params["b1"]), 0.0)
    h = jnp.maximum(lin(h, params["w2"], params["b2"]), 0.0)
    h = jnp.maximum(lin(h, params["w3"], params["b3"]), 0.0)
    z = lin(h, params["w4"], params["b4"])
    if z.shape[-1] == 2:
        return jnp.concatenate(
            [jax.nn.sigmoid(z[:, 0:1]), jnp.tanh(z[:, 1:2])], axis=1)
    return jax.nn.sigmoid(z)


def mlp_reference_f32(x, params):
    """Full-precision reference matching the original PyTorch module."""
    h = jnp.maximum(x @ params["w1"] + params["b1"], 0.0)
    h = jnp.maximum(h @ params["w2"] + params["b2"], 0.0)
    h = jnp.maximum(h @ params["w3"] + params["b3"], 0.0)
    z = h @ params["w4"] + params["b4"]
    if z.shape[-1] == 2:
        return jnp.concatenate(
            [jax.nn.sigmoid(z[:, 0:1]), jnp.tanh(z[:, 1:2])], axis=1)
    return jax.nn.sigmoid(z)


if __name__ == "__main__":
    input_size = 32
    output_size = 2
    batch = 8

    key = jax.random.PRNGKey(0)
    key, kx = jax.random.split(key)
    x = jax.random.normal(kx, (batch, input_size), jnp.float32)
    params = init_params(key, input_size, output_size)
    packed = pack_params(params)

    y = mlp_forward(x, packed, output_size)
    jax.block_until_ready(y)

    y_ref = mlp_reference_bf16(x, params)
    y_f32 = mlp_reference_f32(x, params)

    assert y.shape == (batch, output_size)
    # Tight check against the bf16-matched reference, loose check vs full f32.
    assert jnp.allclose(y, y_ref, atol=2e-3, rtol=2e-3), "mismatch vs bf16 reference"
    assert jnp.allclose(y, y_f32, atol=5e-2, rtol=0.0), "mismatch vs f32 reference"

    print("KERNEL_OK")
</pallas_src>

<mosaic_0001>
module attributes {stable_mosaic.version = 11 : i64} {
  func.func @_mlp_kernel(%arg0: i32, %arg1: memref<16x32xbf16, #tpu.memory_space<vmem>>, %arg2: memref<32x128xbf16, #tpu.memory_space<vmem>>, %arg3: memref<1x128xf32, #tpu.memory_space<vmem>>, %arg4: memref<128x128xbf16, #tpu.memory_space<vmem>>, %arg5: memref<1x128xf32, #tpu.memory_space<vmem>>, %arg6: memref<128x128xbf16, #tpu.memory_space<vmem>>, %arg7: memref<1x128xf32, #tpu.memory_space<vmem>>, %arg8: memref<8x128xbf16, #tpu.memory_space<vmem>>, %arg9: memref<8x1xf32, #tpu.memory_space<vmem>>, %arg10: memref<8x16xf32, #tpu.memory_space<vmem>>) attributes {dimension_semantics = [#tpu.dimension_semantics<parallel>], iteration_bounds = array<i64: 1>, scalar_prefetch = 0 : i64, scratch_operands = 0 : i64, tpu.core_type = #tpu.core_type<tc>, window_params = [{transform_indices = @transform_0, window_bounds = array<i64: 16, 32>}, {pipeline_mode = #tpu.pipeline_mode<synchronous>, transform_indices = @transform_1, window_bounds = array<i64: 32, 128>}, {pipeline_mode = #tpu.pipeline_mode<synchronous>, transform_indices = @transform_2, window_bounds = array<i64: 1, 128>}, {pipeline_mode = #tpu.pipeline_mode<synchronous>, transform_indices = @transform_3, window_bounds = array<i64: 128, 128>}, {pipeline_mode = #tpu.pipeline_mode<synchronous>, transform_indices = @transform_4, window_bounds = array<i64: 1, 128>}, {pipeline_mode = #tpu.pipeline_mode<synchronous>, transform_indices = @transform_5, window_bounds = array<i64: 128, 128>}, {pipeline_mode = #tpu.pipeline_mode<synchronous>, transform_indices = @transform_6, window_bounds = array<i64: 1, 128>}, {pipeline_mode = #tpu.pipeline_mode<synchronous>, transform_indices = @transform_7, window_bounds = array<i64: 8, 128>}, {pipeline_mode = #tpu.pipeline_mode<synchronous>, transform_indices = @transform_8, window_bounds = array<i64: 8, 1>}, {transform_indices = @transform_9, window_bounds = array<i64: 8, 16>}]} {
    %c0 = arith.constant 0 : index
    %c0_0 = arith.constant 0 : index
    %0 = vector.load %arg1[%c0, %c0_0] : memref<16x32xbf16, #tpu.memory_space<vmem>>, vector<16x32xbf16>
    %c0_1 = arith.constant 0 : index
    %c0_2 = arith.constant 0 : index
    %1 = vector.load %arg2[%c0_1, %c0_2] : memref<32x128xbf16, #tpu.memory_space<vmem>>, vector<32x128xbf16>
    %cst = arith.constant dense<0.000000e+00> : vector<16x128xf32>
    %2 = tpu.matmul %0, %1, %cst {dimension_numbers = #tpu.dot_dimension_numbers<[1], [0], [0], [1], [0, 0, 1, 1], [], []>} : vector<16x32xbf16>, vector<32x128xbf16>, vector<16x128xf32> -> vector<16x128xf32>
    %c0_3 = arith.constant 0 : index
    %c0_4 = arith.constant 0 : index
    %3 = vector.load %arg3[%c0_3, %c0_4] : memref<1x128xf32, #tpu.memory_space<vmem>>, vector<1x128xf32>
    %4 = vector.broadcast %3 : vector<1x128xf32> to vector<16x128xf32>
    %5 = arith.addf %2, %4 : vector<16x128xf32>
    %cst_5 = arith.constant 0.000000e+00 : f32
    %6 = vector.broadcast %cst_5 : f32 to vector<16x128xf32>
    %7 = arith.maximumf %5, %6 : vector<16x128xf32>
    %8 = arith.truncf %7 : vector<16x128xf32> to vector<16x128xbf16>
    %c0_6 = arith.constant 0 : index
    %c0_7 = arith.constant 0 : index
    %9 = vector.load %arg4[%c0_6, %c0_7] : memref<128x128xbf16, #tpu.memory_space<vmem>>, vector<128x128xbf16>
    %cst_8 = arith.constant dense<0.000000e+00> : vector<16x128xf32>
    %10 = tpu.matmul %8, %9, %cst_8 {dimension_numbers = #tpu.dot_dimension_numbers<[1], [0], [0], [1], [0, 0, 1, 1], [], []>} : vector<16x128xbf16>, vector<128x128xbf16>, vector<16x128xf32> -> vector<16x128xf32>
    %c0_9 = arith.constant 0 : index
    %c0_10 = arith.constant 0 : index
    %11 = vector.load %arg5[%c0_9, %c0_10] : memref<1x128xf32, #tpu.memory_space<vmem>>, vector<1x128xf32>
    %12 = vector.broadcast %11 : vector<1x128xf32> to vector<16x128xf32>
    %13 = arith.addf %10, %12 : vector<16x128xf32>
    %cst_11 = arith.constant 0.000000e+00 : f32
    %14 = vector.broadcast %cst_11 : f32 to vector<16x128xf32>
    %15 = arith.maximumf %13, %14 : vector<16x128xf32>
    %16 = arith.truncf %15 : vector<16x128xf32> to vector<16x128xbf16>
    %c0_12 = arith.constant 0 : index
    %c0_13 = arith.constant 0 : index
    %17 = vector.load %arg6[%c0_12, %c0_13] : memref<128x128xbf16, #tpu.memory_space<vmem>>, vector<128x128xbf16>
    %cst_14 = arith.constant dense<0.000000e+00> : vector<16x128xf32>
    %18 = tpu.matmul %16, %17, %cst_14 {dimension_numbers = #tpu.dot_dimension_numbers<[1], [0], [0], [1], [0, 0, 1, 1], [], []>} : vector<16x128xbf16>, vector<128x128xbf16>, vector<16x128xf32> -> vector<16x128xf32>
    %c0_15 = arith.constant 0 : index
    %c0_16 = arith.constant 0 : index
    %19 = vector.load %arg7[%c0_15, %c0_16] : memref<1x128xf32, #tpu.memory_space<vmem>>, vector<1x128xf32>
    %20 = vector.broadcast %19 : vector<1x128xf32> to vector<16x128xf32>
    %21 = arith.addf %18, %20 : vector<16x128xf32>
    %cst_17 = arith.constant 0.000000e+00 : f32
    %22 = vector.broadcast %cst_17 : f32 to vector<16x128xf32>
    %23 = arith.maximumf %21, %22 : vector<16x128xf32>
    %24 = arith.truncf %23 : vector<16x128xf32> to vector<16x128xbf16>
    %c0_18 = arith.constant 0 : index
    %c0_19 = arith.constant 0 : index
    %25 = vector.load %arg8[%c0_18, %c0_19] : memref<8x128xbf16, #tpu.memory_space<vmem>>, vector<8x128xbf16>
    %cst_20 = arith.constant dense<0.000000e+00> : vector<8x16xf32>
    %26 = tpu.matmul %25, %24, %cst_20 {dimension_numbers = #tpu.dot_dimension_numbers<[1], [1], [0], [0], [0, 0, 1, 0], [], []>} : vector<8x128xbf16>, vector<16x128xbf16>, vector<8x16xf32> -> vector<8x16xf32>
    %c0_21 = arith.constant 0 : index
    %c0_22 = arith.constant 0 : index
    %27 = vector.load %arg9[%c0_21, %c0_22] : memref<8x1xf32, #tpu.memory_space<vmem>>, vector<8x1xf32>
    %28 = vector.broadcast %27 : vector<8x1xf32> to vector<8x16xf32>
    %29 = arith.addf %26, %28 : vector<8x16xf32>
    %30 = tpu.iota {dimensions = array<i32: 0>} : vector<8x16xi32>
    %c0_i32 = arith.constant 0 : i32
    %31 = vector.broadcast %c0_i32 : i32 to vector<8x16xi32>
    %32 = arith.cmpi eq, %30, %31 : vector<8x16xi32>
    %33 = arith.negf %29 : vector<8x16xf32>
    %34 = math.exp %33 : vector<8x16xf32>
    %cst_23 = arith.constant 1.000000e+00 : f32
    %35 = vector.broadcast %cst_23 : f32 to vector<8x16xf32>
    %36 = arith.addf %35, %34 : vector<8x16xf32>
    %37 = arith.divf %35, %36 : vector<8x16xf32>
    %38 = math.tanh %29 : vector<8x16xf32>
    %39 = arith.select %32, %37, %38 : vector<8x16xi1>, vector<8x16xf32>
    %c0_24 = arith.constant 0 : index
    %c0_25 = arith.constant 0 : index
    %40 = vector.load %arg10[%c0_24, %c0_25] : memref<8x16xf32, #tpu.memory_space<vmem>>, vector<8x16xf32>
    tpu.vector_store %arg10[%c0_24, %c0_25], %39 {strides = array<i32>} : memref<8x16xf32, #tpu.memory_space<vmem>>, vector<8x16xf32>,
    return
  }
  func.func @transform_0(%arg0: i32) -> (i32, i32) {
    %c0_i32 = arith.constant 0 : i32
    %c0_i32_0 = arith.constant 0 : i32
    return %arg0, %c0_i32 : i32, i32
  }
  func.func @transform_1(%arg0: i32) -> (i32, i32) {
    %c0_i32 = arith.constant 0 : i32
    %c0_i32_0 = arith.constant 0 : i32
    %c0_i32_1 = arith.constant 0 : i32
    return %c0_i32, %c0_i32_0 : i32, i32
  }
  func.func @transform_2(%arg0: i32) -> (i32, i32) {
    %c0_i32 = arith.constant 0 : i32
    %c0_i32_0 = arith.constant 0 : i32
    %c0_i32_1 = arith.constant 0 : i32
    return %c0_i32, %c0_i32_0 : i32, i32
  }
  func.func @transform_3(%arg0: i32) -> (i32, i32) {
    %c0_i32 = arith.constant 0 : i32
    %c0_i32_0 = arith.constant 0 : i32
    %c0_i32_1 = arith.constant 0 : i32
    return %c0_i32, %c0_i32_0 : i32, i32
  }
  func.func @transform_4(%arg0: i32) -> (i32, i32) {
    %c0_i32 = arith.constant 0 : i32
    %c0_i32_0 = arith.constant 0 : i32
    %c0_i32_1 = arith.constant 0 : i32
    return %c0_i32, %c0_i32_0 : i32, i32
  }
  func.func @transform_5(%arg0: i32) -> (i32, i32) {
    %c0_i32 = arith.constant 0 : i32
    %c0_i32_0 = arith.constant 0 : i32
    %c0_i32_1 = arith.constant 0 : i32
    return %c0_i32, %c0_i32_0 : i32, i32
  }
  func.func @transform_6(%arg0: i32) -> (i32, i32) {
    %c0_i32 = arith.constant 0 : i32
    %c0_i32_0 = arith.constant 0 : i32
    %c0_i32_1 = arith.constant 0 : i32
    return %c0_i32, %c0_i32_0 : i32, i32
  }
  func.func @transform_7(%arg0: i32) -> (i32, i32) {
    %c0_i32 = arith.constant 0 : i32
    %c0_i32_0 = arith.constant 0 : i32
    %c0_i32_1 = arith.constant 0 : i32
    return %c0_i32, %c0_i32_0 : i32, i32
  }
  func.func @transform_8(%arg0: i32) -> (i32, i32) {
    %c0_i32 = arith.constant 0 : i32
    %c0_i32_0 = arith.constant 0 : i32
    %c0_i32_1 = arith.constant 0 : i32
    return %c0_i32, %c0_i32_0 : i32, i32
  }
  func.func @transform_9(%arg0: i32) -> (i32, i32) {
    %c0_i32 = arith.constant 0 : i32
    %c0_i32_0 = arith.constant 0 : i32
    return %c0_i32, %arg0 : i32, i32
  }
}

</mosaic_0001>

<llo_original>
// kernel: tpu_custom_call.1
$region0: #{tpu_custom_call.1}
  #allocation0 [shape = 'u32[]', space=smem, size = 0x4, offset = 0x4, fixed_abs, tag = 'smem constant byte address 0x4 - core index']
  #allocation1 [shape = 'u32[144,128]{1,0:T(1,128)}', space=vmem, size = 0x12000, scoped, tag = 'internal scratch']
  %s0 = inlined_call_operand.vmem [shape: bf16[16,32], index: 0, kind: input, shape index: {}]
  %s1 = inlined_call_operand.hbm [shape: bf16[32,128], index: 1, kind: input, shape index: {}]
  %s2 = inlined_call_operand.vmem [shape: f32[1,128], index: 2, kind: input, shape index: {}]
  %s3 = inlined_call_operand.hbm [shape: bf16[128,128], index: 3, kind: input, shape index: {}]
  %s4 = inlined_call_operand.vmem [shape: f32[1,128], index: 4, kind: input, shape index: {}]
  %s5 = inlined_call_operand.hbm [shape: bf16[128,128], index: 5, kind: input, shape index: {}]
  %s6 = inlined_call_operand.vmem [shape: f32[1,128], index: 6, kind: input, shape index: {}]
  %s7 = inlined_call_operand.vmem [shape: bf16[8,128], index: 7, kind: input, shape index: {}]
  %s8 = inlined_call_operand.vmem [shape: f32[8,1], index: 8, kind: input, shape index: {}]
  %s9 = inlined_call_operand.hbm [shape: f32[8,16], index: 9, kind: output, shape index: {}]
  %s10 = sld [smem:[#allocation0]]
  $region58: #{tpu_custom_call.1} parent=0
    _
  %s12 = ssub.s32 1, %s10
  %s13 = scalar_select 0, %s12, %s10
  $region1: #{tpu_custom_call.1} parent=0
    #allocation2 [shape = 'u8[8192]{0}', space=vmem, size = 0x2000, scoped, tag = 'input window, operand 1, single buffered']
    #allocation3 [shape = 's32[1]{0}', space=sflag, size = 0x4, scoped, tag = 'scoped memory for tpu_custom_call.1']
    #allocation4 [shape = 's32[1]{0}', space=sflag, size = 0x4, scoped, tag = 'scoped memory for tpu_custom_call.1']
    #allocation5 [shape = 'u8[32768]{0}', space=vmem, size = 0x8000, scoped, tag = 'input window, operand 3, single buffered']
    #allocation6 [shape = 's32[1]{0}', space=sflag, size = 0x4, scoped, tag = 'scoped memory for tpu_custom_call.1']
    #allocation7 [shape = 'u8[32768]{0}', space=vmem, size = 0x8000, scoped, tag = 'input window, operand 5, single buffered']
    #allocation8 [shape = 'u8[4096]{0}', space=vmem, size = 0x1000, scoped, tag = 'output window, operand 0, single buffered']
    %14 = vsyncpa [#allocation3], 0
    %15 = vsyncpa [#allocation6], 0
    %16 = vsyncpa [#allocation4], 0
    // Predicated region
    $region2: #{tpu_custom_call.1} parent=1 // pred_check
      _
    $region3: #{tpu_custom_call.1} parent=1 // pred_check_branch
      %18 = sbr.rel (0) target = $region5
    $region4: #{tpu_custom_call.1} parent=1 // pred_region
      _
    $region5: #{tpu_custom_call.1} parent=1 // pred_fallthru
      _
    // Predicated region
    $region6: #{tpu_custom_call.1} parent=1 // pred_check
      _
    $region7: #{tpu_custom_call.1} parent=1 // pred_check_branch
      %20 = sbr.rel (0) target = $region9
    $region8: #{tpu_custom_call.1} parent=1 // pred_region
      %s22 = ssub.s32 256, 256
      %23 = vsyncadd [#allocation3], %s22
      %s24 = sshll.u32 [#allocation2], 4
      %s25 = int_to_ptr.vmem [resolvable:$true] %s24
      %30 = dma.hbm_to_vmem [thread:$0]  %s1, 256, %s25, [#allocation3], 64, 64, 4
    $region9: #{tpu_custom_call.1} parent=1 // pred_fallthru
      _
    // Predicated region
    $region10: #{tpu_custom_call.1} parent=1 // pred_check
      _
    $region11: #{tpu_custom_call.1} parent=1 // pred_check_branch
      %32 = sbr.rel (0) target = $region13
    $region12: #{tpu_custom_call.1} parent=1 // pred_region
      _
    $region13: #{tpu_custom_call.1} parent=1 // pred_fallthru
      _
    // Predicated region
    $region14: #{tpu_custom_call.1} parent=1 // pred_check
      _
    $region15: #{tpu_custom_call.1} parent=1 // pred_check_branch
      %34 = sbr.rel (0) target = $region17
    $region16: #{tpu_custom_call.1} parent=1 // pred_region
      %s36 = ssub.s32 1024, 1024
      %37 = vsyncadd [#allocation6], %s36
      %s38 = sshll.u32 [#allocation5], 4
      %s39 = int_to_ptr.vmem [resolvable:$true] %s38
      %44 = dma.hbm_to_vmem [thread:$0]  %s3, 1024, %s39, [#allocation6], 64, 64, 4
    $region17: #{tpu_custom_call.1} parent=1 // pred_fallthru
      _
    // Predicated region
    $region18: #{tpu_custom_call.1} parent=1 // pred_check
      _
    $region19: #{tpu_custom_call.1} parent=1 // pred_check_branch
      %46 = sbr.rel (0) target = $region21
    $region20: #{tpu_custom_call.1} parent=1 // pred_region
      _
    $region21: #{tpu_custom_call.1} parent=1 // pred_fallthru
      _
    // Predicated region
    $region22: #{tpu_custom_call.1} parent=1 // pred_check
      _
    $region23: #{tpu_custom_call.1} parent=1 // pred_check_branch
      %48 = sbr.rel (0) target = $region25
    $region24: #{tpu_custom_call.1} parent=1 // pred_region
      %s50 = ssub.s32 1024, 1024
      %51 = vsyncadd [#allocation6], %s50
      %s52 = sshll.u32 [#allocation7], 4
      %s53 = int_to_ptr.vmem [resolvable:$true] %s52
      %58 = dma.hbm_to_vmem [thread:$0]  %s5, 1024, %s53, [#allocation6], 64, 64, 4
    $region25: #{tpu_custom_call.1} parent=1 // pred_fallthru
      _
    // Predicated region
    $region26: #{tpu_custom_call.1} parent=1 // pred_check
      _
    $region27: #{tpu_custom_call.1} parent=1 // pred_check_branch
      %60 = sbr.rel (0) target = $region29
    $region28: #{tpu_custom_call.1} parent=1 // pred_region
      _
    $region29: #{tpu_custom_call.1} parent=1 // pred_fallthru
      _
    // Predicated region
    $region30: #{tpu_custom_call.1} parent=1 // pred_check
      _
    $region31: #{tpu_custom_call.1} parent=1 // pred_check_branch
      %62 = sbr.rel (0) target = $region33
    $region32: #{tpu_custom_call.1} parent=1 // pred_region
      _
    $region33: #{tpu_custom_call.1} parent=1 // pred_fallthru
      _
    // Predicated region
    $region34: #{tpu_custom_call.1} parent=1 // pred_check
      _
    $region35: #{tpu_custom_call.1} parent=1 // pred_check_branch
      %64 = sbr.rel (0) target = $region37
    $region36: #{tpu_custom_call.1} parent=1 // pred_region
      _
    $region37: #{tpu_custom_call.1} parent=1 // pred_fallthru
      _
    // Predicated region
    $region38: #{tpu_custom_call.1} parent=1 // pred_check
      _
    $region39: #{tpu_custom_call.1} parent=1 // pred_check_branch
      %66 = sbr.rel (0) target = $region41
    $region40: #{tpu_custom_call.1} parent=1 // pred_region
      %67 = dma.done [#allocation3], 256
    $region41: #{tpu_custom_call.1} parent=1 // pred_fallthru
      _
    // Predicated region
    $region42: #{tpu_custom_call.1} parent=1 // pred_check
      _
    $region43: #{tpu_custom_call.1} parent=1 // pred_check_branch
      %69 = sbr.rel (0) target = $region45
    $region44: #{tpu_custom_call.1} parent=1 // pred_region
      %70 = dma.done [#allocation6], 1024
    $region45: #{tpu_custom_call.1} parent=1 // pred_fallthru
      _
    // Predicated region
    $region46: #{tpu_custom_call.1} parent=1 // pred_check
      _
    $region47: #{tpu_custom_call.1} parent=1 // pred_check_branch
      %72 = sbr.rel (0) target = $region49
    $region48: #{tpu_custom_call.1} parent=1 // pred_region
      %73 = dma.done [#allocation6], 1024
    $region49: #{tpu_custom_call.1} parent=1 // pred_fallthru
      _
    %v75 = vld [vmem:[%s0] sm:$0xf]
    %v76 = vld [vmem:[%s0 + $0x4] sm:$0xf]
    %v77 = vld [vmem:[#allocation2] sm:$0xf]
    %v78 = vld [vmem:[#allocation2 + $0x4] sm:$0xf]
    %v79 = vld [vmem:[#allocation2 + $0x8] sm:$0xf]
    %v80 = vld [vmem:[#allocation2 + $0xc] sm:$0xf]
    %v81 = vld [vmem:[%s2] sm:$0x1]
    %v83 = vlaneseq
    %v84 = vshrl.u32 %v83, 7
    %v85 = vsub.s32 0, %v84
    %v86 = vrot.slane %v81, %v85
    %v90 = vunpack.c.l.b16 %v75
    %v91 = vunpack.c.l.b16 %v76
    %v92 = vpack.c.b16 %v91, %v90
    %v97 = vunpack.c.l.b16 %v77
    %v98 = vunpack.c.l.b16 %v78
    %v99 = vunpack.c.l.b16 %v79
    %v100 = vunpack.c.l.b16 %v80
    %v101 = vpack.c.b16 %v98, %v97
    %v102 = vpack.c.b16 %v100, %v99
    %vm105 = vcmask 261120
    %v107 = vsel %vm105, %v92, 0
    %109 = vmatprep.subr.bf16.mxu0 0
    %110 = vmatpush1.bf16.msra.mxu0 %v101
    %111 = vmatprep.subr.bf16.mxu0 0
    %112 = vmatpush1.bf16.msra.mxu0 %v102
    %113 = vmatprep.subr.bf16.mxu0 0
    %114 = vmatpush1.bf16.msra.mxu0 0
    %115 = vmatprep.subr.bf16.mxu0 0
    %116 = vmatpush1.bf16.msra.mxu0 0
    %117 = vmatprep.subr.bf16.mxu0 0
    %118 = vmatpush1.bf16.msra.mxu0 0
    %119 = vmatprep.subr.bf16.mxu0 0
    %120 = vmatpush1.bf16.msra.mxu0 0
    %121 = vmatprep.subr.bf16.mxu0 0
    %122 = vmatpush1.bf16.msra.mxu0 0
    %123 = vmatprep.subr.bf16.mxu0 0
    %124 = vmatpush1.bf16.msra.mxu0 0
    %125 = vmatprep.subr.bf16.mxu0 0
    %126 = vmatpush1.bf16.msra.mxu0 0
    %127 = vmatprep.subr.bf16.mxu0 0
    %128 = vmatpush1.bf16.msra.mxu0 0
    %129 = vmatprep.subr.bf16.mxu0 0
    %130 = vmatpush1.bf16.msra.mxu0 0
    %131 = vmatprep.subr.bf16.mxu0 0
    %132 = vmatpush1.bf16.msra.mxu0 0
    %133 = vmatprep.subr.bf16.mxu0 0
    %134 = vmatpush1.bf16.msra.mxu0 0
    %135 = vmatprep.subr.bf16.mxu0 0
    %136 = vmatpush1.bf16.msra.mxu0 0
    %137 = vmatprep.subr.bf16.mxu0 0
    %138 = vmatpush1.bf16.msra.mxu0 0
    %139 = vmatprep.subr.bf16.mxu0 0
    %140 = vmatpush1.bf16.msra.mxu0 0
    %141 = vmatprep.mubr.bf16.mxu0 0
    %142 = vmatmul.mubr.bf16.gmra.mrb[0].mxu0 %v107
    %v143 = vpop.f32.mrb[0].mxu0
    %v144 = vadd.f32 %v86, %v143
    %v145 = vpop.f32.mrb[0].mxu0
    %v146 = vpop.f32.mrb[0].mxu0
    %v147 = vadd.f32 %v86, %v146
    %v148 = vpop.f32.mrb[0].mxu0
    %149 = vdwg.mxu0
    %v150 = vmax.f32 %v144, 0.0
    %v151 = vmax.f32 %v147, 0.0
    %v152 = vpack.c.bf16 %v151, %v150
    %v153 = vld [vmem:[#allocation5] sm:$0xf]
    %v154 = vld [vmem:[#allocation5 + $0x4] sm:$0xf]
    %v155 = vld [vmem:[#allocation5 + $0x8] sm:$0xf]
    %v156 = vld [vmem:[#allocation5 + $0xc] sm:$0xf]
    %v157 = vld [vmem:[#allocation5 + $0x10] sm:$0xf]
    %v158 = vld [vmem:[#allocation5 + $0x14] sm:$0xf]
    %v159 = vld [vmem:[#allocation5 + $0x18] sm:$0xf]
    %v160 = vld [vmem:[#allocation5 + $0x1c] sm:$0xf]
    %v161 = vld [vmem:[#allocation5 + $0x20] sm:$0xf]
    %v162 = vld [vmem:[#allocation5 + $0x24] sm:$0xf]
    %v163 = vld [vmem:[#allocation5 + $0x28] sm:$0xf]
    %v164 = vld [vmem:[#allocation5 + $0x2c] sm:$0xf]
    %v165 = vld [vmem:[#allocation5 + $0x30] sm:$0xf]
    %v166 = vld [vmem:[#allocation5 + $0x34] sm:$0xf]
    %v167 = vld [vmem:[#allocation5 + $0x38] sm:$0xf]
    %v168 = vld [vmem:[#allocation5 + $0x3c] sm:$0xf]
    %v169 = vld [vmem:[%s4] sm:$0x1]
    %v171 = vlaneseq
    %v172 = vshrl.u32 %v171, 7
    %v173 = vsub.s32 0, %v172
    %v174 = vrot.slane %v169, %v173
    %v192 = vunpack.c.l.b16 %v153
    %v193 = vunpack.c.l.b16 %v154
    %v194 = vunpack.c.l.b16 %v155
    %v195 = vunpack.c.l.b16 %v156
    %v196 = vunpack.c.l.b16 %v157
    %v197 = vunpack.c.l.b16 %v158
    %v198 = vunpack.c.l.b16 %v159
    %v199 = vunpack.c.l.b16 %v160
    %v200 = vunpack.c.l.b16 %v161
    %v201 = vunpack.c.l.b16 %v162
    %v202 = vunpack.c.l.b16 %v163
    %v203 = vunpack.c.l.b16 %v164
    %v204 = vunpack.c.l.b16 %v165
    %v205 = vunpack.c.l.b16 %v166
    %v206 = vunpack.c.l.b16 %v167
    %v207 = vunpack.c.l.b16 %v168
    %v208 = vpack.c.b16 %v193, %v192
    %v209 = vpack.c.b16 %v195, %v194
    %v210 = vpack.c.b16 %v197, %v196
    %v211 = vpack.c.b16 %v199, %v198
    %v212 = vpack.c.b16 %v201, %v200
    %v213 = vpack.c.b16 %v203, %v202
    %v214 = vpack.c.b16 %v205, %v204
    %v215 = vpack.c.b16 %v207, %v206
    %224 = vmatprep.subr.bf16.mxu0 0
    %225 = vmatpush1.bf16.msra.mxu0 %v208
    %226 = vmatprep.subr.bf16.mxu0 0
    %227 = vmatpush1.bf16.msra.mxu0 %v209
    %228 = vmatprep.subr.bf16.mxu0 0
    %229 = vmatpush1.bf16.msra.mxu0 %v210
    %230 = vmatprep.subr.bf16.mxu0 0
    %231 = vmatpush1.bf16.msra.mxu0 %v211
    %232 = vmatprep.subr.bf16.mxu0 0
    %233 = vmatpush1.bf16.msra.mxu0 %v212
    %234 = vmatprep.subr.bf16.mxu0 0
    %235 = vmatpush1.bf16.msra.mxu0 %v213
    %236 = vmatprep.subr.bf16.mxu0 0
    %237 = vmatpush1.bf16.msra.mxu0 %v214
    %238 = vmatprep.subr.bf16.mxu0 0
    %239 = vmatpush1.bf16.msra.mxu0 %v215
    %240 = vmatprep.subr.bf16.mxu0 0
    %241 = vmatpush1.bf16.msra.mxu0 0
    %242 = vmatprep.subr.bf16.mxu0 0
    %243 = vmatpush1.bf16.msra.mxu0 0
    %244 = vmatprep.subr.bf16.mxu0 0
    %245 = vmatpush1.bf16.msra.mxu0 0
    %246 = vmatprep.subr.bf16.mxu0 0
    %247 = vmatpush1.bf16.msra.mxu0 0
    %248 = vmatprep.subr.bf16.mxu0 0
    %249 = vmatpush1.bf16.msra.mxu0 0
    %250 = vmatprep.subr.bf16.mxu0 0
    %251 = vmatpush1.bf16.msra.mxu0 0
    %252 = vmatprep.subr.bf16.mxu0 0
    %253 = vmatpush1.bf16.msra.mxu0 0
    %254 = vmatprep.subr.bf16.mxu0 0
    %255 = vmatpush1.bf16.msra.mxu0 0
    %256 = vmatprep.mubr.bf16.mxu0 0
    %257 = vmatmul.mubr.bf16.gmra.mrb[0].mxu0 %v152
    %v258 = vpop.f32.mrb[0].mxu0
    %v259 = vadd.f32 %v174, %v258
    %v260 = vpop.f32.mrb[0].mxu0
    %v261 = vpop.f32.mrb[0].mxu0
    %v262 = vadd.f32 %v174, %v261
    %v263 = vpop.f32.mrb[0].mxu0
    %264 = vdwg.mxu0
    %v265 = vmax.f32 %v259, 0.0
    %v266 = vmax.f32 %v262, 0.0
    %v267 = vpack.c.bf16 %v266, %v265
    %v268 = vld [vmem:[#allocation7] sm:$0xf]
    %v269 = vld [vmem:[#allocation7 + $0x4] sm:$0xf]
    %v270 = vld [vmem:[#allocation7 + $0x8] sm:$0xf]
    %v271 = vld [vmem:[#allocation7 + $0xc] sm:$0xf]
    %v272 = vld [vmem:[#allocation7 + $0x10] sm:$0xf]
    %v273 = vld [vmem:[#allocation7 + $0x14] sm:$0xf]
    %v274 = vld [vmem:[#allocation7 + $0x18] sm:$0xf]
    %v275 = vld [vmem:[#allocation7 + $0x1c] sm:$0xf]
    %v276 = vld [vmem:[#allocation7 + $0x20] sm:$0xf]
    %v277 = vld [vmem:[#allocation7 + $0x24] sm:$0xf]
    %v278 = vld [vmem:[#allocation7 + $0x28] sm:$0xf]
    %v279 = vld [vmem:[#allocation7 + $0x2c] sm:$0xf]
    %v280 = vld [vmem:[#allocation7 + $0x30] sm:$0xf]
    %v281 = vld [vmem:[#allocation7 + $0x34] sm:$0xf]
    %v282 = vld [vmem:[#allocation7 + $0x38] sm:$0xf]
    %v283 = vld [vmem:[#allocation7 + $0x3c] sm:$0xf]
    %v284 = vld [vmem:[%s6] sm:$0x1]
    %v286 = vlaneseq
    %v287 = vshrl.u32 %v286, 7
    %v288 = vsub.s32 0, %v287
    %v289 = vrot.slane %v284, %v288
    %v307 = vunpack.c.l.b16 %v268
    %v308 = vunpack.c.l.b16 %v269
    %v309 = vunpack.c.l.b16 %v270
    %v310 = vunpack.c.l.b16 %v271
    %v311 = vunpack.c.l.b16 %v272
    %v312 = vunpack.c.l.b16 %v273
    %v313 = vunpack.c.l.b16 %v274
    %v314 = vunpack.c.l.b16 %v275
    %v315 = vunpack.c.l.b16 %v276
    %v316 = vunpack.c.l.b16 %v277
    %v317 = vunpack.c.l.b16 %v278
    %v318 = vunpack.c.l.b16 %v279
    %v319 = vunpack.c.l.b16 %v280
    %v320 = vunpack.c.l.b16 %v281
    %v321 = vunpack.c.l.b16 %v282
    %v322 = vunpack.c.l.b16 %v283
    %v323 = vpack.c.b16 %v308, %v307
    %v324 = vpack.c.b16 %v310, %v309
    %v325 = vpack.c.b16 %v312, %v311
    %v326 = vpack.c.b16 %v314, %v313
    %v327 = vpack.c.b16 %v316, %v315
    %v328 = vpack.c.b16 %v318, %v317
    %v329 = vpack.c.b16 %v320, %v319
    %v330 = vpack.c.b16 %v322, %v321
    %339 = vmatprep.subr.bf16.mxu0 0
    %340 = vmatpush1.bf16.msra.mxu0 %v323
    %341 = vmatprep.subr.bf16.mxu0 0
    %342 = vmatpush1.bf16.msra.mxu0 %v324
    %343 = vmatprep.subr.bf16.mxu0 0
    %344 = vmatpush1.bf16.msra.mxu0 %v325
    %345 = vmatprep.subr.bf16.mxu0 0
    %346 = vmatpush1.bf16.msra.mxu0 %v326
    %347 = vmatprep.subr.bf16.mxu0 0
    %348 = vmatpush1.bf16.msra.mxu0 %v327
    %349 = vmatprep.subr.bf16.mxu0 0
    %350 = vmatpush1.bf16.msra.mxu0 %v328
    %351 = vmatprep.subr.bf16.mxu0 0
    %352 = vmatpush1.bf16.msra.mxu0 %v329
    %353 = vmatprep.subr.bf16.mxu0 0
    %354 = vmatpush1.bf16.msra.mxu0 %v330
    %355 = vmatprep.subr.bf16.mxu0 0
    %356 = vmatpush1.bf16.msra.mxu0 0
    %357 = vmatprep.subr.bf16.mxu0 0
    %358 = vmatpush1.bf16.msra.mxu0 0
    %359 = vmatprep.subr.bf16.mxu0 0
    %360 = vmatpush1.bf16.msra.mxu0 0
    %361 = vmatprep.subr.bf16.mxu0 0
    %362 = vmatpush1.bf16.msra.mxu0 0
    %363 = vmatprep.subr.bf16.mxu0 0
    %364 = vmatpush1.bf16.msra.mxu0 0
    %365 = vmatprep.subr.bf16.mxu0 0
    %366 = vmatpush1.bf16.msra.mxu0 0
    %367 = vmatprep.subr.bf16.mxu0 0
    %368 = vmatpush1.bf16.msra.mxu0 0
    %369 = vmatprep.subr.bf16.mxu0 0
    %370 = vmatpush1.bf16.msra.mxu0 0
    %371 = vmatprep.mubr.bf16.mxu0 0
    %372 = vmatmul.mubr.bf16.gmra.mrb[0].mxu0 %v267
    %v373 = vpop.f32.mrb[0].mxu0
    %v374 = vadd.f32 %v289, %v373
    %v375 = vpop.f32.mrb[0].mxu0
    %v376 = vpop.f32.mrb[0].mxu0
    %v377 = vadd.f32 %v289, %v376
    %v378 = vpop.f32.mrb[0].mxu0
    %379 = vdwg.mxu0
    %v380 = vmax.f32 %v374, 0.0
    %v381 = vmax.f32 %v377, 0.0
    %v382 = vpack.c.bf16 %v381, %v380
    %v383 = vld [vmem:[%s7] sm:$0xf]
    %v384 = vld [vmem:[%s8] sm:$0xff]
    %386 = vset.pattern.permute.xlu0 0
    %387 = vperm.xlu0 %386, %v384
    %v388 = vpop.permute.xlu0 %387
    %390 = vmatprep.subr.bf16.mxu0 0
    %391 = vmatpush1.bf16.xpose.msra.mxu0 %v382
    %392 = vmatprep.subr.bf16.mxu0 0
    %393 = vmatpush1.bf16.xpose.msra.mxu0 0
    %394 = vmatprep.subr.bf16.mxu0 0
    %395 = vmatpush1.bf16.xpose.msra.mxu0 0
    %396 = vmatprep.subr.bf16.mxu0 0
    %397 = vmatpush1.bf16.xpose.msra.mxu0 0
    %398 = vmatprep.subr.bf16.mxu0 0
    %399 = vmatpush1.bf16.xpose.msra.mxu0 0
    %400 = vmatprep.subr.bf16.mxu0 0
    %401 = vmatpush1.bf16.xpose.msra.mxu0 0
    %402 = vmatprep.subr.bf16.mxu0 0
    %403 = vmatpush1.bf16.xpose.msra.mxu0 0
    %404 = vmatprep.subr.bf16.mxu0 0
    %405 = vmatpush1.bf16.xpose.msra.mxu0 0
    %406 = vmatprep.subr.bf16.mxu0 0
    %407 = vmatpush1.bf16.xpose.msra.mxu0 0
    %408 = vmatprep.subr.bf16.mxu0 0
    %409 = vmatpush1.bf16.xpose.msra.mxu0 0
    %410 = vmatprep.subr.bf16.mxu0 0
    %411 = vmatpush1.bf16.xpose.msra.mxu0 0
    %412 = vmatprep.subr.bf16.mxu0 0
    %413 = vmatpush1.bf16.xpose.msra.mxu0 0
    %414 = vmatprep.subr.bf16.mxu0 0
    %415 = vmatpush1.bf16.xpose.msra.mxu0 0
    %416 = vmatprep.subr.bf16.mxu0 0
    %417 = vmatpush1.bf16.xpose.msra.mxu0 0
    %418 = vmatprep.subr.bf16.mxu0 0
    %419 = vmatpush1.bf16.xpose.msra.mxu0 0
    %420 = vmatprep.subr.bf16.mxu0 0
    %421 = vmatpush1.bf16.xpose.msra.mxu0 0
    %422 = vmatprep.mubr.bf16.mxu0 0
    %423 = vmatmul.mubr.bf16.gmra.mrb[0].mxu0 %v383
    %v424 = vpop.f32.mrb[0].mxu0
    %v425 = vadd.f32 %v388, %v424
    %v426 = vpop.f32.mrb[0].mxu0
    %v427 = vpop.f32.mrb[0].mxu0
    %v428 = vpop.f32.mrb[0].mxu0
    %429 = vdwg.mxu0
    %v430 = vlaneseq
    %v431 = vshrl.u32 %v430, 7
    %vm432 = vcmp.eq.s32.totalorder %v431, 0
    %v433 = vxor.u32 %v425, 2147483648
    %v434 = vmul.f32 %v433, 1.442695
    %v435 = vpow.pop %v434
    %v436 = vadd.f32 %v435, 1.0
    %v437 = vrcp.pop %v436
    %v438 = vmul.f32 1.0, %v437
    %v439 = vtanh.pop %v425
    %v440 = vsel %vm432, %v438, %v439
    %vm441 = vcmask 130048
    %442 = vst.msk [vmem:[#allocation8] sm:$0xff] %vm441, %v440
    // Predicated region
    $region50: #{tpu_custom_call.1} parent=1 // pred_check
      _
    $region51: #{tpu_custom_call.1} parent=1 // pred_check_branch
      %444 = sbr.rel (0) target = $region53
    $region52: #{tpu_custom_call.1} parent=1 // pred_region
      %s446 = ssub.s32 128, 128
      %447 = vsyncadd [#allocation4], %s446
      %s449 = sshll.u32 [#allocation8], 4
      %s450 = int_to_ptr.vmem [resolvable:$true] %s449
      %452 = dma.vmem_to_hbm [thread:$0]  %s450, 128, %s9, [#allocation4]
    $region53: #{tpu_custom_call.1} parent=1 // pred_fallthru
      _
    // Predicated region
    $region54: #{tpu_custom_call.1} parent=1 // pred_check
      _
    $region55: #{tpu_custom_call.1} parent=1 // pred_check_branch
      %454 = sbr.rel (0) target = $region57
    $region56: #{tpu_custom_call.1} parent=1 // pred_region
      %455 = dma.done [#allocation4], 128
    $region57: #{tpu_custom_call.1} parent=1 // pred_fallthru
      _
    %456 = vsyncpa [#allocation3], 1
    %457 = vsyncpa [#allocation6], 1
    %458 = vsyncpa [#allocation4], 1

</llo_original>
